<compile_context>
chip_gen: v6e
topology: v6e:2x2x1
jax: 0.10.0
libtpu: 0.0.40
codegen_flags: <defaults>
</compile_context>

<pallas_src>
import functools
import math

import jax
import jax.numpy as jnp
from jax import lax
from jax.experimental import pallas as pl
from jax.experimental.pallas import tpu as pltpu


def _round_up(x, m):
    return ((x + m - 1) // m) * m


def _cdiv(a, b):
    return -(-a // b)


# Per-generation defaults: scoped-VMEM limit to request, working-set budget for tile
# sizing (kept below the limit for headroom), max q tile, and whether the chip has
# multiple cores worth keeping occupied.
_DEFAULT_CFG = dict(vmem_limit=None, budget=16 << 20, tq_max=256, megacore=False)
_GEN_CONFIG = {
    "v5e": dict(vmem_limit=64 << 20, budget=48 << 20, tq_max=256, megacore=False),
    "v6e": dict(vmem_limit=96 << 20, budget=80 << 20, tq_max=512, megacore=False),
    "v7x": dict(vmem_limit=48 << 20, budget=40 << 20, tq_max=256, megacore=True),
    "v5p": dict(vmem_limit=96 << 20, budget=80 << 20, tq_max=256, megacore=True),
    "v4":  dict(vmem_limit=96 << 20, budget=80 << 20, tq_max=256, megacore=True),
}


def _tpu_generation():
    try:
        dev = jax.devices()[0]
    except Exception:
        return None
    if getattr(dev, "platform", None) != "tpu":
        return None
    kind = (getattr(dev, "device_kind", "") or "").lower()
    for tag, gen in (("v7", "v7x"), ("v6", "v6e"),
                     ("v5 lite", "v5e"), ("v5lite", "v5e"), ("v5e", "v5e"),
                     ("v5p", "v5p"), ("v5", "v5p"), ("v4", "v4")):
        if tag in kind:
            return gen
    return None


def _sdpa_kernel(q_ref, k_ref, v_ref, *rest, inv_sqrt_dim, has_bias, matmul_dtype):
    # Block refs:
    #   q_ref    (1, tq,    d_pad)
    #   k_ref    (1, k_pad, d_pad)
    #   v_ref    (1, k_pad, d_pad)
    #   bias_ref (1, k_pad)            [only when has_bias]
    #   ctx_ref  (1, tq,    d_pad)
    #   attn_ref (1, tq,    k_pad)
    if has_bias:
        bias_ref, ctx_ref, attn_ref = rest
    else:
        ctx_ref, attn_ref = rest
        bias_ref = None

    q = q_ref[0]
    k = k_ref[0]
    v = v_ref[0]
    if matmul_dtype is not None:
        # Optional: feed the (bf16-native) MXU with bf16 operands, accumulate in f32.
        q = q.astype(matmul_dtype)
        k = k.astype(matmul_dtype)
        v = v.astype(matmul_dtype)

    # Pre-scale q (tq*d elements) instead of the (tq*k) score slab.
    q_scaled = q * jnp.asarray(inv_sqrt_dim, dtype=q.dtype)

    # score = q @ k^T, contracting over d_model -- no explicit transpose of k.
    score = lax.dot_general(
        q_scaled, k,
        dimension_numbers=(((1,), (1,)), ((), ())),
        preferred_element_type=jnp.float32,
    )  # (tq, k_pad), f32

    if has_bias:
        # Additive key-padding bias (0 valid, -1e30 pad): one broadcast add per element.
        score = score + bias_ref[...]

    # Numerically stable softmax over keys in f32.
    m = jnp.max(score, axis=-1, keepdims=True)
    e = jnp.exp(score - m)
    denom = jnp.sum(e, axis=-1, keepdims=True)
    # Exact reciprocal of the (tq, 1) row sums: attn rows sum to 1 to f32 precision.
    # (pl.reciprocal(approx=True) here made the user-visible attn miss the row-sum check.)
    attn = e * (1.0 / denom)

    # context = attn @ v; feed the MXU in v's dtype, accumulate in f32.
    ctx = jnp.dot(attn.astype(v.dtype), v, preferred_element_type=jnp.float32)

    ctx_ref[0] = ctx.astype(ctx_ref.dtype)
    attn_ref[0] = attn.astype(attn_ref.dtype)


def scaled_dot_product_attention(query, key, value, dim, *,
                                 attn_dtype=None,
                                 prefer_bf16_matmul=False,
                                 tq_max=None,
                                 vmem_budget_bytes=None,
                                 vmem_limit_bytes=None):
    """Pallas TPU implementation of ScaledDotProductAttention.forward.

    query: (B, q_len, d_model), key/value: (B, k_len, d_model).
    Returns (context (B, q_len, d_model), attn (B, q_len, k_len)).
    """
    B, q_len, d_model = query.shape
    _, k_len, d_k = key.shape
    assert d_k == d_model
    assert value.shape == (B, k_len, d_model)

    cfg = _GEN_CONFIG.get(_tpu_generation(), _DEFAULT_CFG)
    if tq_max is None:
        tq_max = cfg["tq_max"]
    if vmem_budget_bytes is None:
        vmem_budget_bytes = cfg["budget"]
    if vmem_limit_bytes is None:
        vmem_limit_bytes = cfg["vmem_limit"]

    in_dtype = query.dtype
    ctx_dtype = in_dtype
    attn_out_dtype = jnp.dtype(attn_dtype) if attn_dtype is not None else jnp.dtype(in_dtype)

    matmul_dtype = None
    if prefer_bf16_matmul and jnp.dtype(in_dtype) == jnp.float32:
        matmul_dtype = jnp.bfloat16

    in_itemsize = jnp.dtype(in_dtype).itemsize
    ctx_itemsize = jnp.dtype(ctx_dtype).itemsize
    attn_itemsize = jnp.dtype(attn_out_dtype).itemsize

    # Lane-dense layout: last dims padded to multiples of 128 (lane axis);
    # the q tile (sublane axis) is a multiple of 8.
    d_pad = _round_up(d_model, 128)
    k_pad = _round_up(k_len, 128)
    needs_mask = k_pad > k_len

    # K and V are revisited for every q tile (index_map constant over the inner axis):
    # single-buffer them when double-buffering would eat too much VMEM.
    kv_db_bytes = 2 * 2 * k_pad * d_pad * in_itemsize  # K + V, double-buffered
    kv_buffers = 1 if kv_db_bytes > vmem_budget_bytes // 3 else 2

    def working_set(tq_):
        io = (2 * tq_ * d_pad * in_itemsize                      # q (double-buffered)
              + kv_buffers * 2 * k_pad * d_pad * in_itemsize     # K + V
              + 2 * tq_ * d_pad * ctx_itemsize                   # ctx (double-buffered)
              + 2 * tq_ * k_pad * attn_itemsize)                 # attn (double-buffered)
        if needs_mask:
            io += 2 * k_pad * 4                                  # bias row
        live = 4 * (2 * tq_ * k_pad + tq_ * d_pad)               # f32 score/exp + ctx temps
        return io + live

    tq = min(tq_max, _round_up(q_len, 8))
    while tq > 8 and working_set(tq) > vmem_budget_bytes:
        tq = max(8, _round_up(tq // 2, 8))

    if working_set(8) > vmem_budget_bytes:
        # The K/V footprint is independent of tq; shrinking tq cannot help here.
        # TODO(synk): flash-style k-tiled variant (online softmax + second attn
        # normalization pass) for very long k_len.
        raise ValueError(
            f"k_len={k_len} (padded {k_pad}) x d_model={d_model} (padded {d_pad}) does "
            f"not fit the {vmem_budget_bytes >> 20} MiB VMEM budget even at tq=8; "
            "a k-tiled (flash) variant is required.")

    # Multi-core chips (v7x): make sure the grid has at least 2 steps to occupy.
    if cfg["megacore"] and q_len > 8 and B * _cdiv(q_len, tq) < 2:
        tq = max(8, _round_up(_cdiv(q_len, 2), 8))

    q_pad = _round_up(q_len, tq)

    def maybe_pad(x, rows, cols):
        pr, pc = rows - x.shape[1], cols - x.shape[2]
        if pr == 0 and pc == 0:
            return x
        return jnp.pad(x, ((0, 0), (0, pr), (0, pc)))

    qp = maybe_pad(query, q_pad, d_pad)
    kp = maybe_pad(key, k_pad, d_pad)
    vp = maybe_pad(value, k_pad, d_pad)

    kv_spec_kwargs = {}
    if kv_buffers == 1:
        kv_spec_kwargs = dict(pipeline_mode=pl.Buffered(1))

    in_specs = [
        pl.BlockSpec((1, tq, d_pad), lambda b, i: (b, i, 0)),                      # q tile
        pl.BlockSpec((1, k_pad, d_pad), lambda b, i: (b, 0, 0), **kv_spec_kwargs),  # full K
        pl.BlockSpec((1, k_pad, d_pad), lambda b, i: (b, 0, 0), **kv_spec_kwargs),  # full V
    ]
    inputs = [qp, kp, vp]
    if needs_mask:
        bias = jnp.where(jnp.arange(k_pad) < k_len, 0.0, -1e30).astype(jnp.float32)
        bias = bias[None, :]                                        # (1, k_pad)
        in_specs.append(pl.BlockSpec((1, k_pad), lambda b, i: (0, 0)))
        inputs.append(bias)

    kernel = functools.partial(
        _sdpa_kernel,
        inv_sqrt_dim=1.0 / math.sqrt(dim),
        has_bias=needs_mask,
        matmul_dtype=matmul_dtype,
    )

    grid = (B, q_pad // tq)
    grid_spec = pltpu.PrefetchScalarGridSpec(
        num_scalar_prefetch=0,
        grid=grid,
        in_specs=in_specs,
        out_specs=[
            pl.BlockSpec((1, tq, d_pad), lambda b, i: (b, i, 0)),   # context tile
            pl.BlockSpec((1, tq, k_pad), lambda b, i: (b, i, 0)),   # attn tile
        ],
    )

    # Advisory cost hint for XLA's scheduler.
    flops = 4 * B * q_pad * k_pad * d_pad  # two matmuls, 2 flops/MAC
    bytes_accessed = (in_itemsize * (qp.size + kp.size + vp.size)
                      + ctx_itemsize * B * q_pad * d_pad
                      + attn_itemsize * B * q_pad * k_pad)
    cost = pl.CostEstimate(flops=flops, transcendentals=B * q_pad * k_pad,
                           bytes_accessed=bytes_accessed)

    compiler_kwargs = dict(dimension_semantics=("parallel", "parallel"))
    if vmem_limit_bytes is not None:
        compiler_kwargs["vmem_limit_bytes"] = int(vmem_limit_bytes)

    ctx_p, attn_p = pl.pallas_call(
        kernel,
        out_shape=(
            jax.ShapeDtypeStruct((B, q_pad, d_pad), ctx_dtype),
            jax.ShapeDtypeStruct((B, q_pad, k_pad), attn_out_dtype),
        ),
        grid_spec=grid_spec,
        compiler_params=pltpu.CompilerParams(**compiler_kwargs),
        cost_estimate=cost,
    )(*inputs)

    # Slice padding back off only when it exists (avoid extra HBM round trips).
    context = ctx_p if (q_pad == q_len and d_pad == d_model) else ctx_p[:, :q_len, :d_model]
    attn = attn_p if (q_pad == q_len and k_pad == k_len) else attn_p[:, :q_len, :k_len]
    return context, attn


def _reference(query, key, value, dim):
    score = jnp.einsum("bqd,bkd->bqk", query, key) / math.sqrt(dim)
    attn = jax.nn.softmax(score, axis=-1)
    context = jnp.einsum("bqk,bkd->bqd", attn, value)
    return context, attn


if __name__ == "__main__":
    rng = jax.random.PRNGKey(0)

    # (batch, q_len, k_len, d_model): one aligned-ish small case, one fully unaligned case.
    for (B, q_len, k_len, d_model) in [(2, 8, 8, 32), (1, 20, 48, 40)]:
        dim = d_model  # ScaledDotProductAttention(dim=d_model)
        kq, kk, kv, rng = jax.random.split(rng, 4)
        query = jax.random.normal(kq, (B, q_len, d_model), dtype=jnp.float32)
        key_t = jax.random.normal(kk, (B, k_len, d_model), dtype=jnp.float32)
        value = jax.random.normal(kv, (B, k_len, d_model), dtype=jnp.float32)

        context, attn = scaled_dot_product_attention(query, key_t, value, dim)
        jax.block_until_ready((context, attn))

        ctx_ref, attn_ref = _reference(query, key_t, value, dim)
        assert context.shape == (B, q_len, d_model)
        assert attn.shape == (B, q_len, k_len)
        # Exact reciprocal -> rows of attn sum to 1 to f32 precision even with padded keys.
        assert jnp.allclose(jnp.sum(attn, axis=-1), 1.0, atol=1e-3)
        assert jnp.allclose(attn, attn_ref, atol=2e-3, rtol=2e-3)
        assert jnp.allclose(context, ctx_ref, atol=2e-3, rtol=2e-3)

    print("KERNEL_OK")
</pallas_src>

<mosaic_0001>
module attributes {stable_mosaic.version = 11 : i64} {
  func.func @_sdpa_kernel(%arg0: i32, %arg1: i32, %arg2: memref<1x8x128xf32, #tpu.memory_space<vmem>>, %arg3: memref<1x128x128xf32, #tpu.memory_space<vmem>>, %arg4: memref<1x128x128xf32, #tpu.memory_space<vmem>>, %arg5: memref<1x128xf32, #tpu.memory_space<vmem>>, %arg6: memref<1x8x128xf32, #tpu.memory_space<vmem>>, %arg7: memref<1x8x128xf32, #tpu.memory_space<vmem>>) attributes {dimension_semantics = [#tpu.dimension_semantics<parallel>, #tpu.dimension_semantics<parallel>], iteration_bounds = array<i64: 2, 1>, scalar_prefetch = 0 : i64, scratch_operands = 0 : i64, tpu.core_type = #tpu.core_type<tc>, window_params = [{transform_indices = @transform_0, window_bounds = array<i64: 1, 8, 128>}, {transform_indices = @transform_1, window_bounds = array<i64: 1, 128, 128>}, {transform_indices = @transform_2, window_bounds = array<i64: 1, 128, 128>}, {pipeline_mode = #tpu.pipeline_mode<synchronous>, transform_indices = @transform_3, window_bounds = array<i64: 1, 128>}, {transform_indices = @transform_4, window_bounds = array<i64: 1, 8, 128>}, {transform_indices = @transform_5, window_bounds = array<i64: 1, 8, 128>}]} {
    %c0 = arith.constant 0 : index
    %c0_0 = arith.constant 0 : index
    %c0_1 = arith.constant 0 : index
    %0 = vector.load %arg2[%c0, %c0_0, %c0_1] : memref<1x8x128xf32, #tpu.memory_space<vmem>>, vector<1x8x128xf32>
    %1 = vector.shape_cast %0 : vector<1x8x128xf32> to vector<8x128xf32>
    %c0_2 = arith.constant 0 : index
    %c0_3 = arith.constant 0 : index
    %c0_4 = arith.constant 0 : index
    %2 = vector.load %arg3[%c0_2, %c0_3, %c0_4] : memref<1x128x128xf32, #tpu.memory_space<vmem>>, vector<1x128x128xf32>
    %3 = vector.shape_cast %2 : vector<1x128x128xf32> to vector<128x128xf32>
    %c0_5 = arith.constant 0 : index
    %c0_6 = arith.constant 0 : index
    %c0_7 = arith.constant 0 : index
    %4 = vector.load %arg4[%c0_5, %c0_6, %c0_7] : memref<1x128x128xf32, #tpu.memory_space<vmem>>, vector<1x128x128xf32>
    %5 = vector.shape_cast %4 : vector<1x128x128xf32> to vector<128x128xf32>
    %cst = arith.constant 0.176776692 : f32
    %6 = vector.broadcast %cst : f32 to vector<8x128xf32>
    %7 = arith.mulf %1, %6 : vector<8x128xf32>
    %cst_8 = arith.constant dense<0.000000e+00> : vector<8x128xf32>
    %8 = tpu.matmul %7, %3, %cst_8 {dimension_numbers = #tpu.dot_dimension_numbers<[1], [1], [0], [0], [0, 0, 1, 0], [], []>} : vector<8x128xf32>, vector<128x128xf32>, vector<8x128xf32> -> vector<8x128xf32>
    %c0_9 = arith.constant 0 : index
    %c0_10 = arith.constant 0 : index
    %9 = vector.load %arg5[%c0_9, %c0_10] : memref<1x128xf32, #tpu.memory_space<vmem>>, vector<1x128xf32>
    %10 = vector.broadcast %9 : vector<1x128xf32> to vector<8x128xf32>
    %11 = arith.addf %8, %10 : vector<8x128xf32>
    %cst_11 = arith.constant dense<0xFF800000> : vector<8xf32>
    %12 = vector.multi_reduction <maximumf>, %11, %cst_11 [1] : vector<8x128xf32> to vector<8xf32>
    %13 = vector.shape_cast %12 : vector<8xf32> to vector<8x1xf32>
    %14 = vector.broadcast %13 : vector<8x1xf32> to vector<8x128xf32>
    %15 = arith.subf %11, %14 : vector<8x128xf32>
    %16 = math.exp %15 : vector<8x128xf32>
    %cst_12 = arith.constant dense<0.000000e+00> : vector<8xf32>
    %17 = vector.multi_reduction <add>, %16, %cst_12 [1] : vector<8x128xf32> to vector<8xf32>
    %18 = vector.shape_cast %17 : vector<8xf32> to vector<8x1xf32>
    %cst_13 = arith.constant 1.000000e+00 : f32
    %19 = vector.broadcast %cst_13 : f32 to vector<8x1xf32>
    %20 = arith.divf %19, %18 : vector<8x1xf32>
    %21 = vector.broadcast %20 : vector<8x1xf32> to vector<8x128xf32>
    %22 = arith.mulf %16, %21 : vector<8x128xf32>
    %cst_14 = arith.constant dense<0.000000e+00> : vector<8x128xf32>
    %23 = tpu.matmul %22, %5, %cst_14 {dimension_numbers = #tpu.dot_dimension_numbers<[1], [0], [0], [1], [0, 0, 1, 1], [], []>} : vector<8x128xf32>, vector<128x128xf32>, vector<8x128xf32> -> vector<8x128xf32>
    %c0_15 = arith.constant 0 : index
    %c0_16 = arith.constant 0 : index
    %c0_17 = arith.constant 0 : index
    %24 = vector.load %arg6[%c0_15, %c0_16, %c0_17] : memref<1x8x128xf32, #tpu.memory_space<vmem>>, vector<1x8x128xf32>
    %25 = vector.shape_cast %24 : vector<1x8x128xf32> to vector<8x128xf32>
    %26 = vector.shape_cast %23 : vector<8x128xf32> to vector<1x8x128xf32>
    tpu.vector_store %arg6[%c0_15, %c0_16, %c0_17], %26 {strides = array<i32>} : memref<1x8x128xf32, #tpu.memory_space<vmem>>, vector<1x8x128xf32>,
    %c0_18 = arith.constant 0 : index
    %c0_19 = arith.constant 0 : index
    %c0_20 = arith.constant 0 : index
    %27 = vector.load %arg7[%c0_18, %c0_19, %c0_20] : memref<1x8x128xf32, #tpu.memory_space<vmem>>, vector<1x8x128xf32>
    %28 = vector.shape_cast %27 : vector<1x8x128xf32> to vector<8x128xf32>
    %29 = vector.shape_cast %22 : vector<8x128xf32> to vector<1x8x128xf32>
    tpu.vector_store %arg7[%c0_18, %c0_19, %c0_20], %29 {strides = array<i32>} : memref<1x8x128xf32, #tpu.memory_space<vmem>>, vector<1x8x128xf32>,
    return
  }
  func.func @transform_0(%arg0: i32, %arg1: i32) -> (i32, i32, i32) {
    %c0_i32 = arith.constant 0 : i32
    %c0_i32_0 = arith.constant 0 : i32
    return %arg0, %arg1, %c0_i32 : i32, i32, i32
  }
  func.func @transform_1(%arg0: i32, %arg1: i32) -> (i32, i32, i32) {
    %c0_i32 = arith.constant 0 : i32
    %c0_i32_0 = arith.constant 0 : i32
    %c0_i32_1 = arith.constant 0 : i32
    return %arg0, %c0_i32, %c0_i32_0 : i32, i32, i32
  }
  func.func @transform_2(%arg0: i32, %arg1: i32) -> (i32, i32, i32) {
    %c0_i32 = arith.constant 0 : i32
    %c0_i32_0 = arith.constant 0 : i32
    %c0_i32_1 = arith.constant 0 : i32
    return %arg0, %c0_i32, %c0_i32_0 : i32, i32, i32
  }
  func.func @transform_3(%arg0: i32, %arg1: i32) -> (i32, i32) {
    %c0_i32 = arith.constant 0 : i32
    %c0_i32_0 = arith.constant 0 : i32
    %c0_i32_1 = arith.constant 0 : i32
    return %c0_i32, %c0_i32_0 : i32, i32
  }
  func.func @transform_4(%arg0: i32, %arg1: i32) -> (i32, i32, i32) {
    %c0_i32 = arith.constant 0 : i32
    %c0_i32_0 = arith.constant 0 : i32
    return %arg0, %arg1, %c0_i32 : i32, i32, i32
  }
  func.func @transform_5(%arg0: i32, %arg1: i32) -> (i32, i32, i32) {
    %c0_i32 = arith.constant 0 : i32
    %c0_i32_0 = arith.constant 0 : i32
    return %arg0, %arg1, %c0_i32 : i32, i32, i32
  }
}

</mosaic_0001>

<llo_original>
// kernel: tpu_custom_call.1
$region0: #{tpu_custom_call.1}
  #allocation0 [shape = 'u32[]', space=smem, size = 0x4, offset = 0x4, fixed_abs, tag = 'smem constant byte address 0x4 - core index']
  #allocation1 [shape = 'u32[144,128]{1,0:T(1,128)}', space=vmem, size = 0x12000, scoped, tag = 'internal scratch']
  %s0 = inlined_call_operand.hbm [shape: f32[2,8,128], index: 0, kind: input, shape index: {}]
  %s1 = inlined_call_operand.hbm [shape: f32[2,128,128], index: 1, kind: input, shape index: {}]
  %s2 = inlined_call_operand.hbm [shape: f32[2,128,128], index: 2, kind: input, shape index: {}]
  %s3 = inlined_call_operand.vmem [shape: f32[1,128], index: 3, kind: input, shape index: {}]
  %s4 = inlined_call_operand.hbm [shape: f32[2,8,128], index: 4, kind: output, shape index: {0}]
  %s5 = inlined_call_operand.hbm [shape: f32[2,8,128], index: 5, kind: output, shape index: {1}]
  %6 = xla_tuple %s4, %s5
  %s7 = sld [smem:[#allocation0]]
  $region69: #{tpu_custom_call.1} parent=0
    _
  %s9 = ssub.s32 1, %s7
  %s10 = scalar_select 0, %s9, %s7
  $region1: #{tpu_custom_call.1} parent=0
    #allocation2 [shape = 'u8[8192]{0}', space=vmem, size = 0x2000, scoped, tag = 'input window, operand 0']
    #allocation3 [shape = 's32[2]{0}', space=sflag, size = 0x8, scoped, tag = 'scoped memory for tpu_custom_call.1']
    #allocation4 [shape = 's32[2]{0}', space=sflag, size = 0x8, scoped, tag = 'scoped memory for tpu_custom_call.1']
    #allocation5 [shape = 'u8[131072]{0}', space=vmem, size = 0x20000, scoped, tag = 'input window, operand 1']
    #allocation6 [shape = 's32[2]{0}', space=sflag, size = 0x8, scoped, tag = 'scoped memory for tpu_custom_call.1']
    #allocation7 [shape = 'u8[131072]{0}', space=vmem, size = 0x20000, scoped, tag = 'input window, operand 2']
    #allocation8 [shape = 'u8[8192]{0}', space=vmem, size = 0x2000, scoped, tag = 'output window, operand 0']
    #allocation9 [shape = 'u8[8192]{0}', space=vmem, size = 0x2000, scoped, tag = 'output window, operand 1']
    #allocation10 [shape = 's32[2]{0}', space=sflag, size = 0x8, scoped, tag = 'scoped memory for tpu_custom_call.1']
    %11 = vsyncpa [#allocation3], 0
    %s12 = scalar_lea.sflag [#allocation3], 1
    %13 = vsyncpa %s12, 0
    %14 = vsyncpa [#allocation6], 0
    %s15 = scalar_lea.sflag [#allocation6], 1
    %16 = vsyncpa %s15, 0
    %17 = vsyncpa [#allocation4], 0
    %s18 = scalar_lea.sflag [#allocation4], 1
    %19 = vsyncpa %s18, 0
    %20 = vsyncpa [#allocation10], 0
    %s21 = scalar_lea.sflag [#allocation10], 1
    %22 = vsyncpa %s21, 0
    loop: start=0, step=1, limit=4
    $region2: #{tpu_custom_call.1} parent=1 // loop_pre_header
      _
    $region3: #{tpu_custom_call.1} parent=1 // loop_header
      %s24 = sphi 0, %s28
      %p25 = scmp.ge.s32.totalorder %s24, 4
      %s31 = sphi 0, %s43
      %s32 = sphi 0, %s39
      %s33 = sphi 0, %s31
      %s34 = sphi 0, %s32
      %s35 = sphi 0, %s33
      %s36 = sphi 0, %s34
      %s48 = sphi 0, %s50
      %s51 = sphi 0, %s48
      %s52 = sphi 0, %s51
      %s68 = sphi 0, %s52
      %s74 = sphi 0, %s76
      %s77 = sphi 0, %s74
      %s78 = sphi 0, %s77
      %s94 = sphi 0, %s78
      %s100 = sphi 0, %s102
      %s103 = sphi 0, %s100
      %s104 = sphi 0, %s103
      %s120 = sphi 0, %s104
      %s124 = sphi 0, %s124
      %s126 = sphi 0, %s124
      %s127 = sphi 0, %s126
      %s141 = sphi 0, %s127
      %s149 = sphi 0, %s151
      %s152 = sphi 0, %s149
      %s153 = sphi 0, %s152
      %s169 = sphi 0, %s153
      %s177 = sphi 0, %s179
      %s180 = sphi 0, %s177
      %s181 = sphi 0, %s180
      %s197 = sphi 0, %s181
    $region4: #{tpu_custom_call.1} parent=1 // loop_header_branch
      %27 = sbr.rel (%p25) target = $region8
    $region5: #{tpu_custom_call.1} parent=1 // loop_body
      %s29 = ssub.s32 %s24, 1
      %s30 = ssub.s32 %s24, 2
      %s37 = sadd.s32 1, %s32
      %p38 = scmp.ge.s32.totalorder %s37, 1
      %s39 = scalar_select %p38, 0, %s37
      %s40 = sadd.s32 1, %s31
      %s41 = scalar_select %p38, %s40, %s31
      %p42 = scmp.ge.s32.totalorder %s41, 2
      %s43 = scalar_select %p42, 0, %s41
      %s44 = ssub.s32 %s31, %s43
      %s45 = ssub.s32 %s32, %s39
      %s46 = sor.u32 %s44, %s45
      %p47 = scmp.eq.s32.totalorder %s46, 0
      %s49 = sadd.s32 %s48, 1
      %s50 = scalar_select %p47, %s48, %s49
      %p53 = pneg %p47
      %p54 = scmp.eq.s32.totalorder %s24, 1
      %p55 = por %p53, %p54
      %p56 = scmp.ne.s32.totalorder %s48, %s51
      %p57 = scmp.eq.s32.totalorder %s24, 0
      %p58 = por %p56, %p57
      %p59 = scmp.ne.s32.totalorder %s48, %s51
      %p60 = scmp.eq.s32.totalorder %s29, 1
      %p61 = por %p59, %p60
      %p62 = scmp.ne.s32.totalorder %s51, %s52
      %p63 = scmp.eq.s32.totalorder %s29, 0
      %p64 = por %p62, %p63
      %p65 = scmp.ne.s32.totalorder %s51, %s52
      %p66 = scmp.eq.s32.totalorder %s30, 1
      %p67 = por %p65, %p66
      %p69 = scmp.ne.s32.totalorder %s52, %s68
      %p70 = scmp.eq.s32.totalorder %s30, 0
      %p71 = por %p69, %p70
      %s72 = ssub.s32 %s31, %s43
      %p73 = scmp.eq.s32.totalorder %s72, 0
      %s75 = sadd.s32 %s74, 1
      %s76 = scalar_select %p73, %s74, %s75
      %p79 = pneg %p73
      %p80 = scmp.eq.s32.totalorder %s24, 1
      %p81 = por %p79, %p80
      %p82 = scmp.ne.s32.totalorder %s74, %s77
      %p83 = scmp.eq.s32.totalorder %s24, 0
      %p84 = por %p82, %p83
      %p85 = scmp.ne.s32.totalorder %s74, %s77
      %p86 = scmp.eq.s32.totalorder %s29, 1
      %p87 = por %p85, %p86
      %p88 = scmp.ne.s32.totalorder %s77, %s78
      %p89 = scmp.eq.s32.totalorder %s29, 0
      %p90 = por %p88, %p89
      %p91 = scmp.ne.s32.totalorder %s77, %s78
      %p92 = scmp.eq.s32.totalorder %s30, 1
      %p93 = por %p91, %p92
      %p95 = scmp.ne.s32.totalorder %s78, %s94
      %p96 = scmp.eq.s32.totalorder %s30, 0
      %p97 = por %p95, %p96
      %s98 = ssub.s32 %s31, %s43
      %p99 = scmp.eq.s32.totalorder %s98, 0
      %s101 = sadd.s32 %s100, 1
      %s102 = scalar_select %p99, %s100, %s101
      %p105 = pneg %p99
      %p106 = scmp.eq.s32.totalorder %s24, 1
      %p107 = por %p105, %p106
      %p108 = scmp.ne.s32.totalorder %s100, %s103
      %p109 = scmp.eq.s32.totalorder %s24, 0
      %p110 = por %p108, %p109
      %p111 = scmp.ne.s32.totalorder %s100, %s103
      %p112 = scmp.eq.s32.totalorder %s29, 1
      %p113 = por %p111, %p112
      %p114 = scmp.ne.s32.totalorder %s103, %s104
      %p115 = scmp.eq.s32.totalorder %s29, 0
      %p116 = por %p114, %p115
      %p117 = scmp.ne.s32.totalorder %s103, %s104
      %p118 = scmp.eq.s32.totalorder %s30, 1
      %p119 = por %p117, %p118
      %p121 = scmp.ne.s32.totalorder %s104, %s120
      %p122 = scmp.eq.s32.totalorder %s30, 0
      %p123 = por %p121, %p122
      %s125 = sadd.s32 %s124, 1
      %p128 = scmp.eq.s32.totalorder %s24, 1
      %p129 = scmp.ne.s32.totalorder %s124, %s126
      %p130 = scmp.eq.s32.totalorder %s24, 0
      %p131 = por %p129, %p130
      %p132 = scmp.ne.s32.totalorder %s124, %s126
      %p133 = scmp.eq.s32.totalorder %s29, 1
      %p134 = por %p132, %p133
      %p135 = scmp.ne.s32.totalorder %s126, %s127
      %p136 = scmp.eq.s32.totalorder %s29, 0
      %p137 = por %p135, %p136
      %p138 = scmp.ne.s32.totalorder %s126, %s127
      %p139 = scmp.eq.s32.totalorder %s30, 1
      %p140 = por %p138, %p139
      %p142 = scmp.ne.s32.totalorder %s127, %s141
      %p143 = scmp.eq.s32.totalorder %s30, 0
      %p144 = por %p142, %p143
      %s145 = ssub.s32 %s31, %s43
      %s146 = ssub.s32 %s32, %s39
      %s147 = sor.u32 %s145, %s146
      %p148 = scmp.eq.s32.totalorder %s147, 0
      %s150 = sadd.s32 %s149, 1
      %s151 = scalar_select %p148, %s149, %s150
      %p154 = pneg %p148
      %p155 = scmp.eq.s32.totalorder %s24, 1
      %p156 = por %p154, %p155
      %p157 = scmp.ne.s32.totalorder %s149, %s152
      %p158 = scmp.eq.s32.totalorder %s24, 0
      %p159 = por %p157, %p158
      %p160 = scmp.ne.s32.totalorder %s149, %s152
      %p161 = scmp.eq.s32.totalorder %s29, 1
      %p162 = por %p160, %p161
      %p163 = scmp.ne.s32.totalorder %s152, %s153
      %p164 = scmp.eq.s32.totalorder %s29, 0
      %p165 = por %p163, %p164
      %p166 = scmp.ne.s32.totalorder %s152, %s153
      %p167 = scmp.eq.s32.totalorder %s30, 1
      %p168 = por %p166, %p167
      %p170 = scmp.ne.s32.totalorder %s153, %s169
      %p171 = scmp.eq.s32.totalorder %s30, 0
      %p172 = por %p170, %p171
      %s173 = ssub.s32 %s31, %s43
      %s174 = ssub.s32 %s32, %s39
      %s175 = sor.u32 %s173, %s174
      %p176 = scmp.eq.s32.totalorder %s175, 0
      %s178 = sadd.s32 %s177, 1
      %s179 = scalar_select %p176, %s177, %s178
      %p182 = pneg %p176
      %p183 = scmp.eq.s32.totalorder %s24, 1
      %p184 = por %p182, %p183
      %p185 = scmp.ne.s32.totalorder %s177, %s180
      %p186 = scmp.eq.s32.totalorder %s24, 0
      %p187 = por %p185, %p186
      %p188 = scmp.ne.s32.totalorder %s177, %s180
      %p189 = scmp.eq.s32.totalorder %s29, 1
      %p190 = por %p188, %p189
      %p191 = scmp.ne.s32.totalorder %s180, %s181
      %p192 = scmp.eq.s32.totalorder %s29, 0
      %p193 = por %p191, %p192
      %p194 = scmp.ne.s32.totalorder %s180, %s181
      %p195 = scmp.eq.s32.totalorder %s30, 1
      %p196 = por %p194, %p195
      %p198 = scmp.ne.s32.totalorder %s181, %s197
      %p199 = scmp.eq.s32.totalorder %s30, 0
      %p200 = por %p198, %p199
      %p201 = scmp.le.s32.totalorder 1, %s24
      %p202 = scmp.lt.s32.totalorder %s24, 3
      %p203 = pnand %p201, %p202
      %p204 = pneg %p203
      // Predicated region
      $region9: #{tpu_custom_call.1} parent=5 // pred_check
        _
      $region10: #{tpu_custom_call.1} parent=5 // pred_check_branch
        %206 = sbr.rel (%p203) target = $region12
      $region11: #{tpu_custom_call.1} parent=5 // pred_region
        %s207 = ssub.s32 %s24, 1
        // Predicated region
        $region13: #{tpu_custom_call.1} parent=11 // pred_check
          %p208 = pneg %p137
        $region14: #{tpu_custom_call.1} parent=11 // pred_check_branch
          %210 = sbr.rel (%p208) target = $region16
        $region15: #{tpu_custom_call.1} parent=11 // pred_region
          _
        $region16: #{tpu_custom_call.1} parent=11 // pred_fallthru
          _
      $region12: #{tpu_custom_call.1} parent=5 // pred_fallthru
        _
      %p211 = scmp.lt.s32.totalorder %s24, 2
      // Predicated region
      $region17: #{tpu_custom_call.1} parent=5 // pred_check
        %p212 = pneg %p211
      $region18: #{tpu_custom_call.1} parent=5 // pred_check_branch
        %214 = sbr.rel (%p212) target = $region20
      $region19: #{tpu_custom_call.1} parent=5 // pred_region
        // Predicated region
        $region21: #{tpu_custom_call.1} parent=19 // pred_check
          %p215 = pneg %p58
        $region22: #{tpu_custom_call.1} parent=19 // pred_check_branch
          %217 = sbr.rel (%p215) target = $region24
        $region23: #{tpu_custom_call.1} parent=19 // pred_region
          %s218 = sand.u32 %s48, 1
          %s219 = scalar_lea.sflag [#allocation3], %s218
          %s220 = sand.u32 %s48, 1
          %s221 = smul.addr %s220, 8
          %s222 = scalar_lea.vmem [#allocation2], %s221
          %s224 = ssub.s32 128, 128
          %225 = vsyncadd %s219, %s224
          %s226 = sadd.s32 %s32, %s31
          %s227 = smul.addr %s226, 128
          %s228 = scalar_lea.hbm %s0, %s227
          %s230 = sshll.u32 %s222, 4
          %s231 = int_to_ptr.vmem [resolvable:$true] %s230
          %233 = dma.hbm_to_vmem [thread:$0]  %s228, 128, %s231, %s219
        $region24: #{tpu_custom_call.1} parent=19 // pred_fallthru
          _
        // Predicated region
        $region25: #{tpu_custom_call.1} parent=19 // pred_check
          %p234 = pneg %p84
        $region26: #{tpu_custom_call.1} parent=19 // pred_check_branch
          %236 = sbr.rel (%p234) target = $region28
        $region27: #{tpu_custom_call.1} parent=19 // pred_region
          %s237 = sand.u32 %s24, 1
          %s238 = scalar_lea.sflag [#allocation6], %s237
          %s239 = sand.u32 %s74, 1
          %s240 = smul.addr %s239, 128
          %s241 = scalar_lea.vmem [#allocation5], %s240
          %s243 = ssub.s32 2048, 2048
          %244 = vsyncadd %s238, %s243
          %s245 = smul.addr %s31, 16
          %s246 = smul.addr %s245, 128
          %s247 = scalar_lea.hbm %s1, %s246
          %s248 = sshll.u32 %s241, 4
          %s249 = int_to_ptr.vmem [resolvable:$true] %s248
          %254 = dma.hbm_to_vmem [thread:$0]  %s247, 2048, %s249, %s238, 128, 128, 8
        $region28: #{tpu_custom_call.1} parent=19 // pred_fallthru
          _
        // Predicated region
        $region29: #{tpu_custom_call.1} parent=19 // pred_check
          %p255 = pneg %p110
        $region30: #{tpu_custom_call.1} parent=19 // pred_check_branch
          %257 = sbr.rel (%p255) target = $region32
        $region31: #{tpu_custom_call.1} parent=19 // pred_region
          %s258 = sand.u32 %s24, 1
          %s259 = scalar_lea.sflag [#allocation6], %s258
          %s260 = sand.u32 %s100, 1
          %s261 = smul.addr %s260, 128
          %s262 = scalar_lea.vmem [#allocation7], %s261
          %s264 = ssub.s32 2048, 2048
          %265 = vsyncadd %s259, %s264
          %s266 = smul.addr %s31, 16
          %s267 = smul.addr %s266, 128
          %s268 = scalar_lea.hbm %s2, %s267
          %s269 = sshll.u32 %s262, 4
          %s270 = int_to_ptr.vmem [resolvable:$true] %s269
          %275 = dma.hbm_to_vmem [thread:$0]  %s268, 2048, %s270, %s259, 128, 128, 8
        $region32: #{tpu_custom_call.1} parent=19 // pred_fallthru
          _
      $region20: #{tpu_custom_call.1} parent=5 // pred_fallthru
        _
      %p276 = scmp.le.s32.totalorder 1, %s24
      %p277 = scmp.lt.s32.totalorder %s24, 3
      %p278 = pnand %p276, %p277
      %p279 = pneg %p278
      // Predicated region
      $region33: #{tpu_custom_call.1} parent=5 // pred_check
        _
      $region34: #{tpu_custom_call.1} parent=5 // pred_check_branch
        %281 = sbr.rel (%p278) target = $region36
      $region35: #{tpu_custom_call.1} parent=5 // pred_region
        %s282 = ssub.s32 %s24, 1
        %s283 = sand.u32 %s51, 1
        %s284 = scalar_lea.sflag [#allocation3], %s283
        %s285 = sand.u32 %s51, 1
        %s286 = smul.addr %s285, 8
        %s287 = scalar_lea.vmem [#allocation2], %s286
        // Predicated region
        $region37: #{tpu_custom_call.1} parent=35 // pred_check
          %p288 = pneg %p64
        $region38: #{tpu_custom_call.1} parent=35 // pred_check_branch
          %290 = sbr.rel (%p288) target = $region40
        $region39: #{tpu_custom_call.1} parent=35 // pred_region
          %291 = dma.done %s284, 128
        $region40: #{tpu_custom_call.1} parent=35 // pred_fallthru
          _
        %s292 = sand.u32 %s29, 1
        %s293 = scalar_lea.sflag [#allocation6], %s292
        %s294 = sand.u32 %s77, 1
        %s295 = smul.addr %s294, 128
        %s296 = scalar_lea.vmem [#allocation5], %s295
        // Predicated region
        $region41: #{tpu_custom_call.1} parent=35 // pred_check
          %p297 = pneg %p90
        $region42: #{tpu_custom_call.1} parent=35 // pred_check_branch
          %299 = sbr.rel (%p297) target = $region44
        $region43: #{tpu_custom_call.1} parent=35 // pred_region
          %300 = dma.done %s293, 2048
        $region44: #{tpu_custom_call.1} parent=35 // pred_fallthru
          _
        %s301 = sand.u32 %s29, 1
        %s302 = scalar_lea.sflag [#allocation6], %s301
        %s303 = sand.u32 %s103, 1
        %s304 = smul.addr %s303, 128
        %s305 = scalar_lea.vmem [#allocation7], %s304
        // Predicated region
        $region45: #{tpu_custom_call.1} parent=35 // pred_check
          %p306 = pneg %p116
        $region46: #{tpu_custom_call.1} parent=35 // pred_check_branch
          %308 = sbr.rel (%p306) target = $region48
        $region47: #{tpu_custom_call.1} parent=35 // pred_region
          %309 = dma.done %s302, 2048
        $region48: #{tpu_custom_call.1} parent=35 // pred_fallthru
          _
        %s310 = sand.u32 %s51, 1
        %s311 = scalar_lea.sflag [#allocation3], %s310
        %s312 = sand.u32 %s51, 1
        %s313 = smul.addr %s312, 8
        %s314 = scalar_lea.vmem [#allocation2], %s313
        %p315 = pneg %p64
        %p316 = pneg %p61
        %s317 = sand.u32 %s29, 1
        %s318 = scalar_lea.sflag [#allocation6], %s317
        %s319 = sand.u32 %s77, 1
        %s320 = smul.addr %s319, 128
        %s321 = scalar_lea.vmem [#allocation5], %s320
        %p322 = pneg %p90
        %p323 = pneg %p87
        %s324 = sand.u32 %s29, 1
        %s325 = scalar_lea.sflag [#allocation6], %s324
        %s326 = sand.u32 %s103, 1
        %s327 = smul.addr %s326, 128
        %s328 = scalar_lea.vmem [#allocation7], %s327
        %p329 = pneg %p116
        %p330 = pneg %p113
        %p331 = pneg %p137
        %p332 = pneg %p134
        %p333 = pneg %p165
        %p334 = pneg %p162
        %s335 = sand.u32 %s152, 1
        %s336 = scalar_lea.sflag [#allocation4], %s335
        %s337 = sand.u32 %s152, 1
        %s338 = smul.addr %s337, 8
        %s339 = scalar_lea.vmem [#allocation8], %s338
        %p340 = pneg %p193
        %p341 = pneg %p190
        %s342 = sand.u32 %s180, 1
        %s343 = scalar_lea.sflag [#allocation10], %s342
        %s344 = sand.u32 %s180, 1
        %s345 = smul.addr %s344, 8
        %s346 = scalar_lea.vmem [#allocation9], %s345
        %v347 = vld [vmem:[%s287] sm:$0xff]
        %v348 = vld [vmem:[%s296] sm:$0xff]
        %v349 = vld [vmem:[%s296 + $0x8] sm:$0xff]
        %v350 = vld [vmem:[%s296 + $0x10] sm:$0xff]
        %v351 = vld [vmem:[%s296 + $0x18] sm:$0xff]
        %v352 = vld [vmem:[%s296 + $0x20] sm:$0xff]
        %v353 = vld [vmem:[%s296 + $0x28] sm:$0xff]
        %v354 = vld [vmem:[%s296 + $0x30] sm:$0xff]
        %v355 = vld [vmem:[%s296 + $0x38] sm:$0xff]
        %v356 = vld [vmem:[%s296 + $0x40] sm:$0xff]
        %v357 = vld [vmem:[%s296 + $0x48] sm:$0xff]
        %v358 = vld [vmem:[%s296 + $0x50] sm:$0xff]
        %v359 = vld [vmem:[%s296 + $0x58] sm:$0xff]
        %v360 = vld [vmem:[%s296 + $0x60] sm:$0xff]
        %v361 = vld [vmem:[%s296 + $0x68] sm:$0xff]
        %v362 = vld [vmem:[%s296 + $0x70] sm:$0xff]
        %v363 = vld [vmem:[%s296 + $0x78] sm:$0xff]
        %v364 = vld [vmem:[%s305] sm:$0xff]
        %v365 = vld [vmem:[%s305 + $0x8] sm:$0xff]
        %v366 = vld [vmem:[%s305 + $0x10] sm:$0xff]
        %v367 = vld [vmem:[%s305 + $0x18] sm:$0xff]
        %v368 = vld [vmem:[%s305 + $0x20] sm:$0xff]
        %v369 = vld [vmem:[%s305 + $0x28] sm:$0xff]
        %v370 = vld [vmem:[%s305 + $0x30] sm:$0xff]
        %v371 = vld [vmem:[%s305 + $0x38] sm:$0xff]
        %v372 = vld [vmem:[%s305 + $0x40] sm:$0xff]
        %v373 = vld [vmem:[%s305 + $0x48] sm:$0xff]
        %v374 = vld [vmem:[%s305 + $0x50] sm:$0xff]
        %v375 = vld [vmem:[%s305 + $0x58] sm:$0xff]
        %v376 = vld [vmem:[%s305 + $0x60] sm:$0xff]
        %v377 = vld [vmem:[%s305 + $0x68] sm:$0xff]
        %v378 = vld [vmem:[%s305 + $0x70] sm:$0xff]
        %v379 = vld [vmem:[%s305 + $0x78] sm:$0xff]
        %v380 = vmul.f32 %v347, 0.17677669
        %v381 = vld [vmem:[%s3] sm:$0x1]
        %v383 = vlaneseq
        %v384 = vshrl.u32 %v383, 7
        %v385 = vsub.s32 0, %v384
        %v386 = vrot.slane %v381, %v385
        %388 = vmatprep.subr.mxu0 0.0
        %389 = vmatpush1.xpose.msra.mxu0 %v363
        %390 = vmatprep.subr.mxu0 0.0
        %391 = vmatpush1.xpose.msra.mxu0 %v362
        %392 = vmatprep.subr.mxu0 0.0
        %393 = vmatpush1.xpose.msra.mxu0 %v361
        %394 = vmatprep.subr.mxu0 0.0
        %395 = vmatpush1.xpose.msra.mxu0 %v360
        %396 = vmatprep.subr.mxu0 0.0
        %397 = vmatpush1.xpose.msra.mxu0 %v359
        %398 = vmatprep.subr.mxu0 0.0
        %399 = vmatpush1.xpose.msra.mxu0 %v358
        %400 = vmatprep.subr.mxu0 0.0
        %401 = vmatpush1.xpose.msra.mxu0 %v357
        %402 = vmatprep.subr.mxu0 0.0
        %403 = vmatpush1.xpose.msra.mxu0 %v356
        %404 = vmatprep.subr.mxu0 0.0
        %405 = vmatpush1.xpose.msra.mxu0 %v355
        %406 = vmatprep.subr.mxu0 0.0
        %407 = vmatpush1.xpose.msra.mxu0 %v354
        %408 = vmatprep.subr.mxu0 0.0
        %409 = vmatpush1.xpose.msra.mxu0 %v353
        %410 = vmatprep.subr.mxu0 0.0
        %411 = vmatpush1.xpose.msra.mxu0 %v352
        %412 = vmatprep.subr.mxu0 0.0
        %413 = vmatpush1.xpose.msra.mxu0 %v351
        %414 = vmatprep.subr.mxu0 0.0
        %415 = vmatpush1.xpose.msra.mxu0 %v350
        %416 = vmatprep.subr.mxu0 0.0
        %417 = vmatpush1.xpose.msra.mxu0 %v349
        %418 = vmatprep.subr.mxu0 0.0
        %419 = vmatpush1.xpose.msra.mxu0 %v348
        %420 = vmatprep.subr.mxu0 0.0
        %421 = vmatpush2.xpose.msra.mxu0 0.0
        %422 = vmatprep.subr.mxu0 0.0
        %423 = vmatpush2.xpose.msra.mxu0 0.0
        %424 = vmatprep.subr.mxu0 0.0
        %425 = vmatpush2.xpose.msra.mxu0 0.0
        %426 = vmatprep.subr.mxu0 0.0
        %427 = vmatpush2.xpose.msra.mxu0 0.0
        %428 = vmatprep.subr.mxu0 0.0
        %429 = vmatpush2.xpose.msra.mxu0 0.0
        %430 = vmatprep.subr.mxu0 0.0
        %431 = vmatpush2.xpose.msra.mxu0 0.0
        %432 = vmatprep.subr.mxu0 0.0
        %433 = vmatpush2.xpose.msra.mxu0 0.0
        %434 = vmatprep.subr.mxu0 0.0
        %435 = vmatpush2.xpose.msra.mxu0 0.0
        %436 = vmatprep.subr.mxu0 0.0
        %437 = vmatpush2.xpose.msra.mxu0 0.0
        %438 = vmatprep.subr.mxu0 0.0
        %439 = vmatpush2.xpose.msra.mxu0 0.0
        %440 = vmatprep.subr.mxu0 0.0
        %441 = vmatpush2.xpose.msra.mxu0 0.0
        %442 = vmatprep.subr.mxu0 0.0
        %443 = vmatpush2.xpose.msra.mxu0 0.0
        %444 = vmatprep.subr.mxu0 0.0
        %445 = vmatpush2.xpose.msra.mxu0 0.0
        %446 = vmatprep.subr.mxu0 0.0
        %447 = vmatpush2.xpose.msra.mxu0 0.0
        %448 = vmatprep.subr.mxu0 0.0
        %449 = vmatpush2.xpose.msra.mxu0 0.0
        %450 = vmatprep.subr.mxu0 0.0
        %451 = vmatpush2.xpose.msra.mxu0 0.0
        %452 = vmatprep.mubr.f32.mxu0 0.0
        %453 = vmatmul.mubr.f32.gmra.mxu0 %v380
        %v454 = vpop.f32.mrf.mxu0
        %v455 = vadd.f32 %v386, %v454
        %v456 = vpop.f32.mrf.mxu0
        %457 = vdwg.mxu0
        %458 = vmax.xlane.f32.xlu0 %v455
        %v459 = vpop.xlane.xlu0 %458
        %v460 = vsub.f32 %v455, %v459
        %v461 = vmul.f32 %v460, 1.442695
        %v462 = vpow.pop %v461
        %463 = vadd.xlane.f32.xlu0 %v462
        %v464 = vpop.xlane.xlu0 %463
        %v465 = vrcp.pop %v464
        %v466 = vmul.f32 1.0, %v465
        %v467 = vmul.f32 %v462, %v466
        %468 = vmatprep.subr.mxu0 0.0
        %469 = vmatpush1.msra.mxu0 %v379
        %470 = vmatprep.subr.mxu0 0.0
        %471 = vmatpush1.msra.mxu0 %v378
        %472 = vmatprep.subr.mxu0 0.0
        %473 = vmatpush1.msra.mxu0 %v377
        %474 = vmatprep.subr.mxu0 0.0
        %475 = vmatpush1.msra.mxu0 %v376
        %476 = vmatprep.subr.mxu0 0.0
        %477 = vmatpush1.msra.mxu0 %v375
        %478 = vmatprep.subr.mxu0 0.0
        %479 = vmatpush1.msra.mxu0 %v374
        %480 = vmatprep.subr.mxu0 0.0
        %481 = vmatpush1.msra.mxu0 %v373
        %482 = vmatprep.subr.mxu0 0.0
        %483 = vmatpush1.msra.mxu0 %v372
        %484 = vmatprep.subr.mxu0 0.0
        %485 = vmatpush1.msra.mxu0 %v371
        %486 = vmatprep.subr.mxu0 0.0
        %487 = vmatpush1.msra.mxu0 %v370
        %488 = vmatprep.subr.mxu0 0.0
        %489 = vmatpush1.msra.mxu0 %v369
        %490 = vmatprep.subr.mxu0 0.0
        %491 = vmatpush1.msra.mxu0 %v368
        %492 = vmatprep.subr.mxu0 0.0
        %493 = vmatpush1.msra.mxu0 %v367
        %494 = vmatprep.subr.mxu0 0.0
        %495 = vmatpush1.msra.mxu0 %v366
        %496 = vmatprep.subr.mxu0 0.0
        %497 = vmatpush1.msra.mxu0 %v365
        %498 = vmatprep.subr.mxu0 0.0
        %499 = vmatpush1.msra.mxu0 %v364
        %500 = vmatprep.subr.mxu0 0.0
        %501 = vmatpush2.msra.mxu0 0.0
        %502 = vmatprep.subr.mxu0 0.0
        %503 = vmatpush2.msra.mxu0 0.0
        %504 = vmatprep.subr.mxu0 0.0
        %505 = vmatpush2.msra.mxu0 0.0
        %506 = vmatprep.subr.mxu0 0.0
        %507 = vmatpush2.msra.mxu0 0.0
        %508 = vmatprep.subr.mxu0 0.0
        %509 = vmatpush2.msra.mxu0 0.0
        %510 = vmatprep.subr.mxu0 0.0
        %511 = vmatpush2.msra.mxu0 0.0
        %512 = vmatprep.subr.mxu0 0.0
        %513 = vmatpush2.msra.mxu0 0.0
        %514 = vmatprep.subr.mxu0 0.0
        %515 = vmatpush2.msra.mxu0 0.0
        %516 = vmatprep.subr.mxu0 0.0
        %517 = vmatpush2.msra.mxu0 0.0
        %518 = vmatprep.subr.mxu0 0.0
        %519 = vmatpush2.msra.mxu0 0.0
        %520 = vmatprep.subr.mxu0 0.0
        %521 = vmatpush2.msra.mxu0 0.0
        %522 = vmatprep.subr.mxu0 0.0
        %523 = vmatpush2.msra.mxu0 0.0
        %524 = vmatprep.subr.mxu0 0.0
        %525 = vmatpush2.msra.mxu0 0.0
        %526 = vmatprep.subr.mxu0 0.0
        %527 = vmatpush2.msra.mxu0 0.0
        %528 = vmatprep.subr.mxu0 0.0
        %529 = vmatpush2.msra.mxu0 0.0
        %530 = vmatprep.subr.mxu0 0.0
        %531 = vmatpush2.msra.mxu0 0.0
        %532 = vmatprep.mubr.f32.mxu0 0.0
        %533 = vmatmul.mubr.f32.gmra.mxu0 %v467
        %v534 = vpop.f32.mrf.mxu0
        %v535 = vadd.f32 0.0, %v534
        %v536 = vpop.f32.mrf.mxu0
        %537 = vdwg.mxu0
        %538 = vst [vmem:[%s339] sm:$0xff] %v535
        %539 = vst [vmem:[%s346] sm:$0xff] %v467
        %s540 = sand.u32 %s152, 1
        %s541 = scalar_lea.sflag [#allocation4], %s540
        %s542 = sand.u32 %s152, 1
        %s543 = smul.addr %s542, 8
        %s544 = scalar_lea.vmem [#allocation8], %s543
        %s545 = sand.u32 %s180, 1
        %s546 = scalar_lea.sflag [#allocation10], %s545
        %s547 = sand.u32 %s180, 1
        %s548 = smul.addr %s547, 8
        %s549 = scalar_lea.vmem [#allocation9], %s548
        // Predicated region
        $region49: #{tpu_custom_call.1} parent=35 // pred_check
          %p550 = pneg %p162
        $region50: #{tpu_custom_call.1} parent=35 // pred_check_branch
          %552 = sbr.rel (%p550) target = $region52
        $region51: #{tpu_custom_call.1} parent=35 // pred_region
          %s554 = ssub.s32 128, 128
          %555 = vsyncadd %s541, %s554
          %s556 = sadd.s32 %s34, %s33
          %s557 = smul.addr %s556, 128
          %s558 = scalar_lea.hbm %s4, %s557
          %s560 = sshll.u32 %s544, 4
          %s561 = int_to_ptr.vmem [resolvable:$true] %s560
          %563 = dma.vmem_to_hbm [thread:$0]  %s561, 128, %s558, %s541
        $region52: #{tpu_custom_call.1} parent=35 // pred_fallthru
          _
        // Predicated region
        $region53: #{tpu_custom_call.1} parent=35 // pred_check
          %p564 = pneg %p190
        $region54: #{tpu_custom_call.1} parent=35 // pred_check_branch
          %566 = sbr.rel (%p564) target = $region56
        $region55: #{tpu_custom_call.1} parent=35 // pred_region
          %s568 = ssub.s32 128, 128
          %569 = vsyncadd %s546, %s568
          %s570 = sadd.s32 %s34, %s33
          %s571 = smul.addr %s570, 128
          %s572 = scalar_lea.hbm %s5, %s571
          %s574 = sshll.u32 %s549, 4
          %s575 = int_to_ptr.vmem [resolvable:$true] %s574
          %577 = dma.vmem_to_hbm [thread:$0]  %s575, 128, %s572, %s546
        $region56: #{tpu_custom_call.1} parent=35 // pred_fallthru
          _
      $region36: #{tpu_custom_call.1} parent=5 // pred_fallthru
        _
      %p578 = scmp.le.s32.totalorder 2, %s24
      // Predicated region
      $region57: #{tpu_custom_call.1} parent=5 // pred_check
        %p579 = pneg %p578
      $region58: #{tpu_custom_call.1} parent=5 // pred_check_branch
        %581 = sbr.rel (%p579) target = $region60
      $region59: #{tpu_custom_call.1} parent=5 // pred_region
        %s582 = ssub.s32 %s24, 2
        // Predicated region
        $region61: #{tpu_custom_call.1} parent=59 // pred_check
          %p583 = pneg %p168
        $region62: #{tpu_custom_call.1} parent=59 // pred_check_branch
          %585 = sbr.rel (%p583) target = $region64
        $region63: #{tpu_custom_call.1} parent=59 // pred_region
          %s586 = sand.u32 %s153, 1
          %s587 = scalar_lea.sflag [#allocation4], %s586
          %s588 = sand.u32 %s153, 1
          %s589 = smul.addr %s588, 8
          %s590 = scalar_lea.vmem [#allocation8], %s589
          %591 = dma.done %s587, 128
        $region64: #{tpu_custom_call.1} parent=59 // pred_fallthru
          _
        // Predicated region
        $region65: #{tpu_custom_call.1} parent=59 // pred_check
          %p592 = pneg %p196
        $region66: #{tpu_custom_call.1} parent=59 // pred_check_branch
          %594 = sbr.rel (%p592) target = $region68
        $region67: #{tpu_custom_call.1} parent=59 // pred_region
          %s595 = sand.u32 %s181, 1
          %s596 = scalar_lea.sflag [#allocation10], %s595
          %s597 = sand.u32 %s181, 1
          %s598 = smul.addr %s597, 8
          %s599 = scalar_lea.vmem [#allocation9], %s598
          %600 = dma.done %s596, 128
        $region68: #{tpu_custom_call.1} parent=59 // pred_fallthru
          _
      $region60: #{tpu_custom_call.1} parent=5 // pred_fallthru
        _
    $region6: #{tpu_custom_call.1} parent=1 // loop_footer
      %s28 = sadd.s32 1, %s24
    $region7: #{tpu_custom_call.1} parent=1 // loop_footer_branch
      %23 = sbr.rel target = $region3
    $region8: #{tpu_custom_call.1} parent=1 // loop_exit
      _
    %601 = vsyncpa [#allocation3], 1
    %s602 = scalar_lea.sflag [#allocation3], 1
    %603 = vsyncpa %s602, 1
    %604 = vsyncpa [#allocation6], 1
    %s605 = scalar_lea.sflag [#allocation6], 1
    %606 = vsyncpa %s605, 1
    %607 = vsyncpa [#allocation4], 1
    %s608 = scalar_lea.sflag [#allocation4], 1
    %609 = vsyncpa %s608, 1
    %610 = vsyncpa [#allocation10], 1
    %s611 = scalar_lea.sflag [#allocation10], 1
    %612 = vsyncpa %s611, 1

</llo_original>
